<compile_context>
chip_gen: v5e
topology: v5e:2x2
jax: 0.10.0
libtpu: 0.0.40
codegen_flags: <defaults>
</compile_context>

<pallas_src>
import functools

import jax
import jax.numpy as jnp
from jax import lax
from jax.experimental import pallas as pl
from jax.experimental.pallas import tpu as pltpu

_OUT_W = 16                         # lane-padded packed output width
_VMEM_LIMIT_BYTES = 32 * 1024 * 1024   # raise v5e's 16 MiB default; fits v7x 64 MiB
_VMEM_TILE_BUDGET = 24 * 1024 * 1024   # budget used when sizing the batch tile
_MAX_TILE_ROWS = 1024


def _round_up(x, m):
    return (x + m - 1) // m * m


def _pose_kernel(feat_ref, w1_ref, b1_ref, w2_ref, b2_ref, out_ref):
    """Two fused MXU matmuls for all 3 heads + Ortho6d2Mat epilogue (f32)."""
    feat = feat_ref[...]                                            # (TB, Din)

    # ---- fused head stack: 2 MXU passes, f32 accumulation -------------------
    h = jnp.dot(feat, w1_ref[...], preferred_element_type=jnp.float32) + b1_ref[...]
    h = jnp.maximum(h, 0.0)                                         # ReLU (TB, 3*mid)
    h = h.astype(w2_ref.dtype)                                      # no-op in f32 mode
    y2 = jnp.dot(h, w2_ref[...], preferred_element_type=jnp.float32) + b2_ref[...]
    # y2 lanes: [x_raw(0:3) | y_raw(3:6) | t(6:9) | s(9:12) | 0(12:16)]

    # ---- Ortho6d2Mat epilogue: column (TB,1) VPU arithmetic + EUP rsqrt ------
    a0, a1, a2 = y2[:, 0:1], y2[:, 1:2], y2[:, 2:3]                 # x_raw
    b0, b1, b2 = y2[:, 3:4], y2[:, 4:5], y2[:, 5:6]                 # y_raw

    # matches torch.nn.functional.normalize: v / max(||v||, 1e-12)
    inv_b = lax.rsqrt(jnp.maximum(b0 * b0 + b1 * b1 + b2 * b2, 1e-24))
    y0, y1, yy2 = b0 * inv_b, b1 * inv_b, b2 * inv_b                # y = normalize(y_raw)

    c0 = a1 * yy2 - a2 * y1                                         # cross(x_raw, y)
    c1 = a2 * y0 - a0 * yy2
    c2 = a0 * y1 - a1 * y0
    inv_c = lax.rsqrt(jnp.maximum(c0 * c0 + c1 * c1 + c2 * c2, 1e-24))
    z0, z1, z2 = c0 * inv_c, c1 * inv_c, c2 * inv_c                 # z = normalize(.)

    x0 = y1 * z2 - yy2 * z1                                         # x = cross(y, z)
    x1 = yy2 * z0 - y0 * z2
    x2 = y0 * z1 - y1 * z0

    # ---- assembly: full-width selects over lane ids (no concat) -------------
    # Output lanes: [x(0:3) | y(3:6) | t(6:9) | s(9:12) | z(12:15) | pad(15)]
    # t/s (and the zero pad lane) pass straight through from y2.
    lane = lax.broadcasted_iota(jnp.int32, y2.shape, 1)
    out = y2
    for k, v in ((0, x0), (1, x1), (2, x2),
                 (3, y0), (4, y1), (5, yy2),
                 (12, z0), (13, z1), (14, z2)):
        out = jnp.where(lane == k, v, out)
    out_ref[...] = out


def _pack_params(params, matmul_dtype):
    """Pack 3 heads: W1 side-by-side (Din, 3*mid); W2 block-diagonal (3*mid, 16)."""
    mid = params["w2r"].shape[0]

    w1 = jnp.concatenate([params["w1r"], params["w1t"], params["w1s"]], axis=1)
    b1 = jnp.concatenate([params["b1r"], params["b1t"], params["b1s"]], axis=1)

    w2 = jnp.zeros((3 * mid, _OUT_W), jnp.float32)
    w2 = w2.at[0 * mid:1 * mid, 0:6].set(params["w2r"])
    w2 = w2.at[1 * mid:2 * mid, 6:9].set(params["w2t"])
    w2 = w2.at[2 * mid:3 * mid, 9:12].set(params["w2s"])

    b2 = jnp.zeros((1, _OUT_W), jnp.float32)
    b2 = (b2.at[:, 0:6].set(params["b2r"])
             .at[:, 6:9].set(params["b2t"])
             .at[:, 9:12].set(params["b2s"]))
    # Weights in matmul dtype (bf16 halves DMA/VMEM footprint); biases stay f32.
    return w1.astype(matmul_dtype), b1.astype(jnp.float32), w2.astype(matmul_dtype), b2


def _pick_tile_rows(batch, din, feat_isz, w_isz, hid, max_tile_rows):
    """Largest 16-aligned batch tile that fits a conservative VMEM budget.

    Budget assumes Pallas double-buffers every spec (including the constant
    index_map weights), so the resident-weight 2x is accounted for explicitly.
    """
    weight_bytes = 2 * (din * hid + hid * _OUT_W) * w_isz + 2 * (hid + _OUT_W) * 4
    per_row_bytes = 2 * din * feat_isz + 2 * _OUT_W * 4
    budget_rows = max((_VMEM_TILE_BUDGET - weight_bytes) // per_row_bytes, 16)
    tb = min(_round_up(batch, 16), _MAX_TILE_ROWS, max_tile_rows, budget_rows)
    return int(max((tb // 16) * 16, 16))


@functools.partial(jax.jit, static_argnames=("matmul_dtype", "max_tile_rows"))
def pose_estimater_forward(inst_feat, params, index=None, *,
                           matmul_dtype=jnp.bfloat16,
                           max_tile_rows=_MAX_TILE_ROWS):
    """inst_feat: (B, 1, input_dim) f32. Returns (r:(B,3,3), t:(B,3), s:(B,3)).

    `index` is unused by the forward pass (kept for signature parity).
    """
    del index
    feat = jnp.squeeze(inst_feat, axis=1)                           # (B, Din)
    batch, din = feat.shape

    w1, b1, w2, b2 = _pack_params(params, matmul_dtype)             # XLA glue
    hid = w1.shape[1]
    feat = feat.astype(matmul_dtype)

    feat_isz = jnp.dtype(matmul_dtype).itemsize
    tb = _pick_tile_rows(batch, din, feat_isz, feat_isz, hid, max_tile_rows)
    grid = (pl.cdiv(batch, tb),)     # no feat padding; ragged last block is fine

    flops = 2 * batch * din * hid + 2 * batch * hid * _OUT_W + 40 * batch
    bytes_accessed = (batch * din * feat_isz
                      + (din * hid + hid * _OUT_W) * feat_isz
                      + (hid + _OUT_W) * 4
                      + batch * _OUT_W * 4)
    cost = pl.CostEstimate(flops=flops, transcendentals=2 * batch,
                           bytes_accessed=bytes_accessed)

    out = pl.pallas_call(
        _pose_kernel,
        out_shape=jax.ShapeDtypeStruct((batch, _OUT_W), jnp.float32),
        grid=grid,
        in_specs=[
            pl.BlockSpec((tb, din), lambda i: (i, 0)),              # feat: batch-tiled
            pl.BlockSpec((din, hid), lambda i: (0, 0)),             # W1: VMEM-resident
            pl.BlockSpec((1, hid), lambda i: (0, 0)),               # b1: resident
            pl.BlockSpec((hid, _OUT_W), lambda i: (0, 0)),          # W2: resident
            pl.BlockSpec((1, _OUT_W), lambda i: (0, 0)),            # b2: resident
        ],
        out_specs=pl.BlockSpec((tb, _OUT_W), lambda i: (i, 0)),
        compiler_params=pltpu.CompilerParams(
            dimension_semantics=("parallel",),
            vmem_limit_bytes=_VMEM_LIMIT_BYTES),
        cost_estimate=cost,
    )(feat, w1, b1, w2, b2)

    # Unpack: [x | y | t | s | z | pad] -> (r, t, s); columns of r are (x, y, z).
    x = out[:, 0:3]
    y = out[:, 3:6]
    t = out[:, 6:9]
    s = out[:, 9:12]
    z = out[:, 12:15]
    r = jnp.stack([x, y, z], axis=2)
    return r, t, s


def init_params(key, input_dim, middle_dim):
    """Deterministic synthetic weights, Linear stored as (in, out)."""
    def linear(k, fan_in, fan_out):
        kw, kb = jax.random.split(k)
        bound = 1.0 / jnp.sqrt(fan_in)
        w = jax.random.uniform(kw, (fan_in, fan_out), jnp.float32, -bound, bound)
        b = jax.random.uniform(kb, (1, fan_out), jnp.float32, -bound, bound)
        return w, b

    ks = jax.random.split(key, 6)
    params = {}
    params["w1r"], params["b1r"] = linear(ks[0], input_dim, middle_dim)
    params["w2r"], params["b2r"] = linear(ks[1], middle_dim, 6)
    params["w1t"], params["b1t"] = linear(ks[2], input_dim, middle_dim)
    params["w2t"], params["b2t"] = linear(ks[3], middle_dim, 3)
    params["w1s"], params["b1s"] = linear(ks[4], input_dim, middle_dim)
    params["w2s"], params["b2s"] = linear(ks[5], middle_dim, 3)
    return params


def _reference_forward(inst_feat, params):
    """Pure-JAX f32 reference mirroring the PyTorch module."""
    feat = jnp.squeeze(inst_feat, axis=1)

    def mlp(w1, b1, w2, b2):
        h = jnp.maximum(feat @ w1 + b1, 0.0)
        return h @ w2 + b2

    r6 = mlp(params["w1r"], params["b1r"], params["w2r"], params["b2r"])
    t = mlp(params["w1t"], params["b1t"], params["w2t"], params["b2t"])
    s = mlp(params["w1s"], params["b1s"], params["w2s"], params["b2s"])

    def normalize(v):
        n = jnp.sqrt(jnp.sum(v * v, axis=1, keepdims=True))
        return v / jnp.maximum(n, 1e-12)

    x_raw, y_raw = r6[:, 0:3], r6[:, 3:6]
    y = normalize(y_raw)
    z = normalize(jnp.cross(x_raw, y))
    x = jnp.cross(y, z)
    r = jnp.stack([x, y, z], axis=2)
    return r, t, s


if __name__ == "__main__":
    key = jax.random.PRNGKey(0)

    def run_case(batch, input_dim, middle_dim, matmul_dtype, max_tile_rows,
                 atol, rtol, seed_off):
        k_feat, k_param = jax.random.split(jax.random.fold_in(key, seed_off))
        inst_feat = jax.random.normal(k_feat, (batch, 1, input_dim), jnp.float32)
        index = jnp.zeros((batch,), jnp.int32)  # unused by forward
        params = init_params(k_param, input_dim, middle_dim)

        r, t, s = pose_estimater_forward(inst_feat, params, index,
                                         matmul_dtype=matmul_dtype,
                                         max_tile_rows=max_tile_rows)
        jax.block_until_ready((r, t, s))

        r_ref, t_ref, s_ref = _reference_forward(inst_feat, params)
        assert r.shape == (batch, 3, 3) and t.shape == (batch, 3) and s.shape == (batch, 3)
        assert jnp.allclose(r, r_ref, atol=atol, rtol=rtol), "r mismatch"
        assert jnp.allclose(t, t_ref, atol=atol, rtol=rtol), "t mismatch"
        assert jnp.allclose(s, s_ref, atol=atol, rtol=rtol), "s mismatch"

    # Case 1: tiny batch (B < tile), single grid step, f32 matmul path.
    run_case(2, 32, 16, jnp.float32, _MAX_TILE_ROWS, 1e-4, 1e-4, 1)
    # Case 2: B > tile and B % tile != 0 -> 3-step grid with a ragged last block.
    run_case(37, 64, 32, jnp.float32, 16, 1e-4, 1e-4, 2)
    # Case 3: default bf16 matmul path (f32 accumulation/epilogue), looser tol.
    run_case(37, 64, 32, jnp.bfloat16, 16, 5e-2, 5e-2, 3)

    print("KERNEL_OK")
</pallas_src>

<mosaic_0001>
module attributes {stable_mosaic.version = 11 : i64} {
  func.func @_pose_kernel(%arg0: i32, %arg1: memref<16x32xf32, #tpu.memory_space<vmem>>, %arg2: memref<32x48xf32, #tpu.memory_space<vmem>>, %arg3: memref<1x48xf32, #tpu.memory_space<vmem>>, %arg4: memref<48x16xf32, #tpu.memory_space<vmem>>, %arg5: memref<1x16xf32, #tpu.memory_space<vmem>>, %arg6: memref<16x16xf32, #tpu.memory_space<vmem>>) attributes {dimension_semantics = [#tpu.dimension_semantics<parallel>], iteration_bounds = array<i64: 1>, scalar_prefetch = 0 : i64, scratch_operands = 0 : i64, tpu.core_type = #tpu.core_type<tc>, window_params = [{transform_indices = @transform_0, window_bounds = array<i64: 16, 32>}, {pipeline_mode = #tpu.pipeline_mode<synchronous>, transform_indices = @transform_1, window_bounds = array<i64: 32, 48>}, {pipeline_mode = #tpu.pipeline_mode<synchronous>, transform_indices = @transform_2, window_bounds = array<i64: 1, 48>}, {pipeline_mode = #tpu.pipeline_mode<synchronous>, transform_indices = @transform_3, window_bounds = array<i64: 48, 16>}, {pipeline_mode = #tpu.pipeline_mode<synchronous>, transform_indices = @transform_4, window_bounds = array<i64: 1, 16>}, {transform_indices = @transform_5, window_bounds = array<i64: 16, 16>}]} {
    %c0 = arith.constant 0 : index
    %c0_0 = arith.constant 0 : index
    %0 = vector.load %arg1[%c0, %c0_0] : memref<16x32xf32, #tpu.memory_space<vmem>>, vector<16x32xf32>
    %c0_1 = arith.constant 0 : index
    %c0_2 = arith.constant 0 : index
    %1 = vector.load %arg2[%c0_1, %c0_2] : memref<32x48xf32, #tpu.memory_space<vmem>>, vector<32x48xf32>
    %cst = arith.constant dense<0.000000e+00> : vector<16x48xf32>
    %2 = tpu.matmul %0, %1, %cst {dimension_numbers = #tpu.dot_dimension_numbers<[1], [0], [0], [1], [0, 0, 1, 1], [], []>} : vector<16x32xf32>, vector<32x48xf32>, vector<16x48xf32> -> vector<16x48xf32>
    %c0_3 = arith.constant 0 : index
    %c0_4 = arith.constant 0 : index
    %3 = vector.load %arg3[%c0_3, %c0_4] : memref<1x48xf32, #tpu.memory_space<vmem>>, vector<1x48xf32>
    %4 = vector.broadcast %3 : vector<1x48xf32> to vector<16x48xf32>
    %5 = arith.addf %2, %4 : vector<16x48xf32>
    %cst_5 = arith.constant 0.000000e+00 : f32
    %6 = vector.broadcast %cst_5 : f32 to vector<16x48xf32>
    %7 = arith.maximumf %5, %6 : vector<16x48xf32>
    %c0_6 = arith.constant 0 : index
    %c0_7 = arith.constant 0 : index
    %8 = vector.load %arg4[%c0_6, %c0_7] : memref<48x16xf32, #tpu.memory_space<vmem>>, vector<48x16xf32>
    %cst_8 = arith.constant dense<0.000000e+00> : vector<16x16xf32>
    %9 = tpu.matmul %7, %8, %cst_8 {dimension_numbers = #tpu.dot_dimension_numbers<[1], [0], [0], [1], [0, 0, 1, 1], [], []>} : vector<16x48xf32>, vector<48x16xf32>, vector<16x16xf32> -> vector<16x16xf32>
    %c0_9 = arith.constant 0 : index
    %c0_10 = arith.constant 0 : index
    %10 = vector.load %arg5[%c0_9, %c0_10] : memref<1x16xf32, #tpu.memory_space<vmem>>, vector<1x16xf32>
    %11 = vector.broadcast %10 : vector<1x16xf32> to vector<16x16xf32>
    %12 = arith.addf %9, %11 : vector<16x16xf32>
    %13 = vector.extract_strided_slice %12 {offsets = [0, 0], sizes = [16, 1], strides = [1, 1]} : vector<16x16xf32> to vector<16x1xf32>
    %14 = vector.extract_strided_slice %12 {offsets = [0, 1], sizes = [16, 1], strides = [1, 1]} : vector<16x16xf32> to vector<16x1xf32>
    %15 = vector.extract_strided_slice %12 {offsets = [0, 2], sizes = [16, 1], strides = [1, 1]} : vector<16x16xf32> to vector<16x1xf32>
    %16 = vector.extract_strided_slice %12 {offsets = [0, 3], sizes = [16, 1], strides = [1, 1]} : vector<16x16xf32> to vector<16x1xf32>
    %17 = vector.extract_strided_slice %12 {offsets = [0, 4], sizes = [16, 1], strides = [1, 1]} : vector<16x16xf32> to vector<16x1xf32>
    %18 = vector.extract_strided_slice %12 {offsets = [0, 5], sizes = [16, 1], strides = [1, 1]} : vector<16x16xf32> to vector<16x1xf32>
    %19 = arith.mulf %16, %16 : vector<16x1xf32>
    %20 = arith.mulf %17, %17 : vector<16x1xf32>
    %21 = arith.addf %19, %20 : vector<16x1xf32>
    %22 = arith.mulf %18, %18 : vector<16x1xf32>
    %23 = arith.addf %21, %22 : vector<16x1xf32>
    %cst_11 = arith.constant 1.000000e-24 : f32
    %24 = vector.broadcast %cst_11 : f32 to vector<16x1xf32>
    %25 = arith.maximumf %23, %24 : vector<16x1xf32>
    %26 = math.rsqrt %25 : vector<16x1xf32>
    %27 = arith.mulf %16, %26 : vector<16x1xf32>
    %28 = arith.mulf %17, %26 : vector<16x1xf32>
    %29 = arith.mulf %18, %26 : vector<16x1xf32>
    %30 = arith.mulf %14, %29 : vector<16x1xf32>
    %31 = arith.mulf %15, %28 : vector<16x1xf32>
    %32 = arith.subf %30, %31 : vector<16x1xf32>
    %33 = arith.mulf %15, %27 : vector<16x1xf32>
    %34 = arith.mulf %13, %29 : vector<16x1xf32>
    %35 = arith.subf %33, %34 : vector<16x1xf32>
    %36 = arith.mulf %13, %28 : vector<16x1xf32>
    %37 = arith.mulf %14, %27 : vector<16x1xf32>
    %38 = arith.subf %36, %37 : vector<16x1xf32>
    %39 = arith.mulf %32, %32 : vector<16x1xf32>
    %40 = arith.mulf %35, %35 : vector<16x1xf32>
    %41 = arith.addf %39, %40 : vector<16x1xf32>
    %42 = arith.mulf %38, %38 : vector<16x1xf32>
    %43 = arith.addf %41, %42 : vector<16x1xf32>
    %cst_12 = arith.constant 1.000000e-24 : f32
    %44 = vector.broadcast %cst_12 : f32 to vector<16x1xf32>
    %45 = arith.maximumf %43, %44 : vector<16x1xf32>
    %46 = math.rsqrt %45 : vector<16x1xf32>
    %47 = arith.mulf %32, %46 : vector<16x1xf32>
    %48 = arith.mulf %35, %46 : vector<16x1xf32>
    %49 = arith.mulf %38, %46 : vector<16x1xf32>
    %50 = arith.mulf %28, %49 : vector<16x1xf32>
    %51 = arith.mulf %29, %48 : vector<16x1xf32>
    %52 = arith.subf %50, %51 : vector<16x1xf32>
    %53 = arith.mulf %29, %47 : vector<16x1xf32>
    %54 = arith.mulf %27, %49 : vector<16x1xf32>
    %55 = arith.subf %53, %54 : vector<16x1xf32>
    %56 = arith.mulf %27, %48 : vector<16x1xf32>
    %57 = arith.mulf %28, %47 : vector<16x1xf32>
    %58 = arith.subf %56, %57 : vector<16x1xf32>
    %59 = tpu.iota {dimensions = array<i32: 1>} : vector<16x16xi32>
    %c0_i32 = arith.constant 0 : i32
    %60 = vector.broadcast %c0_i32 : i32 to vector<16x16xi32>
    %61 = arith.cmpi eq, %59, %60 : vector<16x16xi32>
    %62 = vector.shape_cast %52 : vector<16x1xf32> to vector<16x1xf32>
    %63 = vector.broadcast %62 : vector<16x1xf32> to vector<16x16xf32>
    %64 = arith.select %61, %63, %12 : vector<16x16xi1>, vector<16x16xf32>
    %c1_i32 = arith.constant 1 : i32
    %65 = vector.broadcast %c1_i32 : i32 to vector<16x16xi32>
    %66 = arith.cmpi eq, %59, %65 : vector<16x16xi32>
    %67 = vector.shape_cast %55 : vector<16x1xf32> to vector<16x1xf32>
    %68 = vector.broadcast %67 : vector<16x1xf32> to vector<16x16xf32>
    %69 = arith.select %66, %68, %64 : vector<16x16xi1>, vector<16x16xf32>
    %c2_i32 = arith.constant 2 : i32
    %70 = vector.broadcast %c2_i32 : i32 to vector<16x16xi32>
    %71 = arith.cmpi eq, %59, %70 : vector<16x16xi32>
    %72 = vector.shape_cast %58 : vector<16x1xf32> to vector<16x1xf32>
    %73 = vector.broadcast %72 : vector<16x1xf32> to vector<16x16xf32>
    %74 = arith.select %71, %73, %69 : vector<16x16xi1>, vector<16x16xf32>
    %c3_i32 = arith.constant 3 : i32
    %75 = vector.broadcast %c3_i32 : i32 to vector<16x16xi32>
    %76 = arith.cmpi eq, %59, %75 : vector<16x16xi32>
    %77 = vector.shape_cast %27 : vector<16x1xf32> to vector<16x1xf32>
    %78 = vector.broadcast %77 : vector<16x1xf32> to vector<16x16xf32>
    %79 = arith.select %76, %78, %74 : vector<16x16xi1>, vector<16x16xf32>
    %c4_i32 = arith.constant 4 : i32
    %80 = vector.broadcast %c4_i32 : i32 to vector<16x16xi32>
    %81 = arith.cmpi eq, %59, %80 : vector<16x16xi32>
    %82 = vector.shape_cast %28 : vector<16x1xf32> to vector<16x1xf32>
    %83 = vector.broadcast %82 : vector<16x1xf32> to vector<16x16xf32>
    %84 = arith.select %81, %83, %79 : vector<16x16xi1>, vector<16x16xf32>
    %c5_i32 = arith.constant 5 : i32
    %85 = vector.broadcast %c5_i32 : i32 to vector<16x16xi32>
    %86 = arith.cmpi eq, %59, %85 : vector<16x16xi32>
    %87 = vector.shape_cast %29 : vector<16x1xf32> to vector<16x1xf32>
    %88 = vector.broadcast %87 : vector<16x1xf32> to vector<16x16xf32>
    %89 = arith.select %86, %88, %84 : vector<16x16xi1>, vector<16x16xf32>
    %c12_i32 = arith.constant 12 : i32
    %90 = vector.broadcast %c12_i32 : i32 to vector<16x16xi32>
    %91 = arith.cmpi eq, %59, %90 : vector<16x16xi32>
    %92 = vector.shape_cast %47 : vector<16x1xf32> to vector<16x1xf32>
    %93 = vector.broadcast %92 : vector<16x1xf32> to vector<16x16xf32>
    %94 = arith.select %91, %93, %89 : vector<16x16xi1>, vector<16x16xf32>
    %c13_i32 = arith.constant 13 : i32
    %95 = vector.broadcast %c13_i32 : i32 to vector<16x16xi32>
    %96 = arith.cmpi eq, %59, %95 : vector<16x16xi32>
    %97 = vector.shape_cast %48 : vector<16x1xf32> to vector<16x1xf32>
    %98 = vector.broadcast %97 : vector<16x1xf32> to vector<16x16xf32>
    %99 = arith.select %96, %98, %94 : vector<16x16xi1>, vector<16x16xf32>
    %c14_i32 = arith.constant 14 : i32
    %100 = vector.broadcast %c14_i32 : i32 to vector<16x16xi32>
    %101 = arith.cmpi eq, %59, %100 : vector<16x16xi32>
    %102 = vector.shape_cast %49 : vector<16x1xf32> to vector<16x1xf32>
    %103 = vector.broadcast %102 : vector<16x1xf32> to vector<16x16xf32>
    %104 = arith.select %101, %103, %99 : vector<16x16xi1>, vector<16x16xf32>
    %c0_13 = arith.constant 0 : index
    %c0_14 = arith.constant 0 : index
    %105 = vector.load %arg6[%c0_13, %c0_14] : memref<16x16xf32, #tpu.memory_space<vmem>>, vector<16x16xf32>
    tpu.vector_store %arg6[%c0_13, %c0_14], %104 {strides = array<i32>} : memref<16x16xf32, #tpu.memory_space<vmem>>, vector<16x16xf32>,
    return
  }
  func.func @transform_0(%arg0: i32) -> (i32, i32) {
    %c0_i32 = arith.constant 0 : i32
    %c0_i32_0 = arith.constant 0 : i32
    return %arg0, %c0_i32 : i32, i32
  }
  func.func @transform_1(%arg0: i32) -> (i32, i32) {
    %c0_i32 = arith.constant 0 : i32
    %c0_i32_0 = arith.constant 0 : i32
    %c0_i32_1 = arith.constant 0 : i32
    return %c0_i32, %c0_i32_0 : i32, i32
  }
  func.func @transform_2(%arg0: i32) -> (i32, i32) {
    %c0_i32 = arith.constant 0 : i32
    %c0_i32_0 = arith.constant 0 : i32
    %c0_i32_1 = arith.constant 0 : i32
    return %c0_i32, %c0_i32_0 : i32, i32
  }
  func.func @transform_3(%arg0: i32) -> (i32, i32) {
    %c0_i32 = arith.constant 0 : i32
    %c0_i32_0 = arith.constant 0 : i32
    %c0_i32_1 = arith.constant 0 : i32
    return %c0_i32, %c0_i32_0 : i32, i32
  }
  func.func @transform_4(%arg0: i32) -> (i32, i32) {
    %c0_i32 = arith.constant 0 : i32
    %c0_i32_0 = arith.constant 0 : i32
    %c0_i32_1 = arith.constant 0 : i32
    return %c0_i32, %c0_i32_0 : i32, i32
  }
  func.func @transform_5(%arg0: i32) -> (i32, i32) {
    %c0_i32 = arith.constant 0 : i32
    %c0_i32_0 = arith.constant 0 : i32
    return %arg0, %c0_i32 : i32, i32
  }
}

</mosaic_0001>

<llo_original>
// kernel: pose_estimater_forward.1
$region0: #{pose_estimater_forward.1}
  #allocation0 [shape = 'u32[]', space=smem, size = 0x4, offset = 0x4, fixed_abs, tag = 'smem constant byte address 0x4 - core index']
  #allocation1 [shape = 'u32[72,128]{1,0:T(1,128)}', space=vmem, size = 0x9000, scoped, tag = 'internal scratch']
  %s0 = inlined_call_operand.vmem [shape: f32[2,32], index: 0, kind: input, shape index: {}]
  %s1 = inlined_call_operand.vmem [shape: f32[32,48], index: 1, kind: input, shape index: {}]
  %s2 = inlined_call_operand.vmem [shape: f32[1,48], index: 2, kind: input, shape index: {}]
  %s3 = inlined_call_operand.vmem [shape: f32[48,16], index: 3, kind: input, shape index: {}]
  %s4 = inlined_call_operand.vmem [shape: f32[1,16], index: 4, kind: input, shape index: {}]
  %s5 = inlined_call_operand.vmem [shape: f32[2,16], index: 5, kind: output, shape index: {}]
  %s6 = sld [smem:[#allocation0]]
  $region60: #{pose_estimater_forward.1} parent=0
    _
  %s8 = ssub.s32 1, %s6
  %s9 = scalar_select 0, %s8, %s6
  $region1: #{pose_estimater_forward.1} parent=0
    #allocation2 [shape = 'u8[8192]{0}', space=vmem, size = 0x2000, scoped, tag = 'output window, operand 0, single buffered']
    // Predicated region
    $region2: #{pose_estimater_forward.1} parent=1 // pred_check
      _
    $region3: #{pose_estimater_forward.1} parent=1 // pred_check_branch
      %11 = sbr.rel (0) target = $region5
    $region4: #{pose_estimater_forward.1} parent=1 // pred_region
      _
    $region5: #{pose_estimater_forward.1} parent=1 // pred_fallthru
      _
    // Predicated region
    $region6: #{pose_estimater_forward.1} parent=1 // pred_check
      _
    $region7: #{pose_estimater_forward.1} parent=1 // pred_check_branch
      %13 = sbr.rel (0) target = $region9
    $region8: #{pose_estimater_forward.1} parent=1 // pred_region
      _
    $region9: #{pose_estimater_forward.1} parent=1 // pred_fallthru
      _
    // Predicated region
    $region10: #{pose_estimater_forward.1} parent=1 // pred_check
      _
    $region11: #{pose_estimater_forward.1} parent=1 // pred_check_branch
      %15 = sbr.rel (0) target = $region13
    $region12: #{pose_estimater_forward.1} parent=1 // pred_region
      _
    $region13: #{pose_estimater_forward.1} parent=1 // pred_fallthru
      _
    // Predicated region
    $region14: #{pose_estimater_forward.1} parent=1 // pred_check
      _
    $region15: #{pose_estimater_forward.1} parent=1 // pred_check_branch
      %17 = sbr.rel (0) target = $region17
    $region16: #{pose_estimater_forward.1} parent=1 // pred_region
      _
    $region17: #{pose_estimater_forward.1} parent=1 // pred_fallthru
      _
    // Predicated region
    $region18: #{pose_estimater_forward.1} parent=1 // pred_check
      _
    $region19: #{pose_estimater_forward.1} parent=1 // pred_check_branch
      %19 = sbr.rel (0) target = $region21
    $region20: #{pose_estimater_forward.1} parent=1 // pred_region
      _
    $region21: #{pose_estimater_forward.1} parent=1 // pred_fallthru
      _
    %v20 = vld [vmem:[%s0] sm:$0xff]
    %v21 = vld [vmem:[%s0 + $0x8] sm:$0xff]
    %v22 = vld [vmem:[%s1] sm:$0xff]
    %v23 = vld [vmem:[%s1 + $0x8] sm:$0xff]
    %v24 = vld [vmem:[%s1 + $0x10] sm:$0xff]
    %v25 = vld [vmem:[%s1 + $0x18] sm:$0xff]
    %v26 = vld [vmem:[%s2] sm:$0x1]
    %v28 = vperm.slane %v26, 0
    %vm30 = vcmask 261120
    %v32 = vsel %vm30, %v20, 0
    %v35 = vsel %vm30, %v21, 0
    %37 = vmatpush.msra.mxu0 0.0
    %38 = vmatpush.msra.mxu0 0.0
    %39 = vmatpush.msra.mxu0 0.0
    %40 = vmatpush.msra.mxu0 0.0
    %41 = vmatpush.msra.mxu0 0.0
    %42 = vmatpush.msra.mxu0 0.0
    %43 = vmatpush.msra.mxu0 0.0
    %44 = vmatpush.msra.mxu0 0.0
    %45 = vmatpush.msra.mxu0 0.0
    %46 = vmatpush.msra.mxu0 0.0
    %47 = vmatpush.msra.mxu0 0.0
    %48 = vmatpush.msra.mxu0 0.0
    %49 = vmatpush.msra.mxu0 %v25
    %50 = vmatpush.msra.mxu0 %v24
    %51 = vmatpush.msra.mxu0 %v23
    %52 = vmatpush.msra.mxu0 %v22
    %53 = vmatmul.f32.gmra.mxu0 %v32
    %v54 = vpop.f32.mrf.mxu0
    %v55 = vadd.f32 %v28, %v54
    %56 = vmatmul.f32.gmra.mxu0 %v35
    %v57 = vpop.f32.mrf.mxu0
    %v58 = vadd.f32 %v28, %v57
    %59 = vdwg.mxu0
    %v60 = vmax.f32 %v55, 0.0
    %v61 = vmax.f32 %v58, 0.0
    %v62 = vld [vmem:[%s3] sm:$0xff]
    %v63 = vld [vmem:[%s3 + $0x8] sm:$0xff]
    %v64 = vld [vmem:[%s3 + $0x10] sm:$0xff]
    %v65 = vld [vmem:[%s3 + $0x18] sm:$0xff]
    %v66 = vld [vmem:[%s3 + $0x20] sm:$0xff]
    %v67 = vld [vmem:[%s3 + $0x28] sm:$0xff]
    %v68 = vld [vmem:[%s4] sm:$0x1]
    %v70 = vperm.slane %v68, 0
    %vm72 = vcmask 392192
    %v74 = vsel %vm72, %v60, 0
    %v77 = vsel %vm72, %v61, 0
    %79 = vmatpush.msra.mxu0 0.0
    %80 = vmatpush.msra.mxu0 0.0
    %81 = vmatpush.msra.mxu0 0.0
    %82 = vmatpush.msra.mxu0 0.0
    %83 = vmatpush.msra.mxu0 0.0
    %84 = vmatpush.msra.mxu0 0.0
    %85 = vmatpush.msra.mxu0 0.0
    %86 = vmatpush.msra.mxu0 0.0
    %87 = vmatpush.msra.mxu0 0.0
    %88 = vmatpush.msra.mxu0 0.0
    %89 = vmatpush.msra.mxu0 %v67
    %90 = vmatpush.msra.mxu0 %v66
    %91 = vmatpush.msra.mxu0 %v65
    %92 = vmatpush.msra.mxu0 %v64
    %93 = vmatpush.msra.mxu0 %v63
    %94 = vmatpush.msra.mxu0 %v62
    %95 = vmatmul.f32.gmra.mxu0 %v74
    %v96 = vpop.f32.mrf.mxu0
    %v97 = vadd.f32 %v70, %v96
    %98 = vmatmul.f32.gmra.mxu0 %v77
    %v99 = vpop.f32.mrf.mxu0
    %v100 = vadd.f32 %v70, %v99
    %101 = vdwg.mxu0
    %v102 = vmul.f32 %v97, %v97
    %v103 = vmul.f32 %v100, %v100
    %106 = vrot.lane.b32.xlu0 %v102, 127
    %v107 = vpop.permute.xlu0 %106
    %108 = vrot.lane.b32.xlu0 %v103, 127
    %v109 = vpop.permute.xlu0 %108
    %v112 = vadd.f32 %v102, %v107
    %v113 = vadd.f32 %v103, %v109
    %114 = vrot.lane.b32.xlu0 %v102, 126
    %v115 = vpop.permute.xlu0 %114
    %116 = vrot.lane.b32.xlu0 %v103, 126
    %v117 = vpop.permute.xlu0 %116
    %v120 = vadd.f32 %v112, %v115
    %v121 = vadd.f32 %v113, %v117
    %v122 = vmax.f32 %v120, 1e-24
    %v123 = vmax.f32 %v121, 1e-24
    %v124 = vrsqrt.pop %v122
    %v125 = vmul.f32 %v124, %v122
    %v126 = vmul.f32 %v125, %v124
    %v127 = vmul.f32 0.5, %v126
    %v128 = vsub.f32 1.5, %v127
    %v129 = vmul.f32 %v124, %v128
    %vm130 = vweird.f32 %v122
    %vm131 = vweird.f32 %v124
    %vm132 = vmor %vm130, %vm131
    %v133 = vsel %vm132, %v124, %v129
    %v134 = vrsqrt.pop %v123
    %v135 = vmul.f32 %v134, %v123
    %v136 = vmul.f32 %v135, %v134
    %v137 = vmul.f32 0.5, %v136
    %v138 = vsub.f32 1.5, %v137
    %v139 = vmul.f32 %v134, %v138
    %vm140 = vweird.f32 %v123
    %vm141 = vweird.f32 %v134
    %vm142 = vmor %vm140, %vm141
    %v143 = vsel %vm142, %v134, %v139
    %v144 = vmul.f32 %v97, %v133
    %v145 = vmul.f32 %v100, %v143
    %148 = vrot.lane.b32.xlu0 %v133, 1
    %v149 = vpop.permute.xlu0 %148
    %150 = vrot.lane.b32.xlu0 %v143, 1
    %v151 = vpop.permute.xlu0 %150
    %v154 = vmul.f32 %v97, %v149
    %v155 = vmul.f32 %v100, %v151
    %156 = vrot.lane.b32.xlu0 %v133, 2
    %v157 = vpop.permute.xlu0 %156
    %158 = vrot.lane.b32.xlu0 %v143, 2
    %v159 = vpop.permute.xlu0 %158
    %v162 = vmul.f32 %v97, %v157
    %v163 = vmul.f32 %v100, %v159
    %166 = vrot.lane.b32.xlu0 %v162, 124
    %v167 = vpop.permute.xlu0 %166
    %168 = vrot.lane.b32.xlu0 %v163, 124
    %v169 = vpop.permute.xlu0 %168
    %v172 = vmul.f32 %v97, %v167
    %v173 = vmul.f32 %v100, %v169
    %176 = vrot.lane.b32.xlu0 %v154, 126
    %v177 = vpop.permute.xlu0 %176
    %178 = vrot.lane.b32.xlu0 %v155, 126
    %v179 = vpop.permute.xlu0 %178
    %v182 = vmul.f32 %v97, %v177
    %v183 = vmul.f32 %v100, %v179
    %186 = vrot.lane.b32.xlu0 %v182, 127
    %v187 = vpop.permute.xlu0 %186
    %188 = vrot.lane.b32.xlu0 %v183, 127
    %v189 = vpop.permute.xlu0 %188
    %v192 = vsub.f32 %v172, %v187
    %v193 = vsub.f32 %v173, %v189
    %196 = vrot.lane.b32.xlu0 %v144, 127
    %v197 = vpop.permute.xlu0 %196
    %198 = vrot.lane.b32.xlu0 %v145, 127
    %v199 = vpop.permute.xlu0 %198
    %v202 = vmul.f32 %v97, %v197
    %v203 = vmul.f32 %v100, %v199
    %204 = vrot.lane.b32.xlu0 %v162, 123
    %v205 = vpop.permute.xlu0 %204
    %206 = vrot.lane.b32.xlu0 %v163, 123
    %v207 = vpop.permute.xlu0 %206
    %v210 = vmul.f32 %v97, %v205
    %v211 = vmul.f32 %v100, %v207
    %214 = vrot.lane.b32.xlu0 %v210, 2
    %v215 = vpop.permute.xlu0 %214
    %216 = vrot.lane.b32.xlu0 %v211, 2
    %v217 = vpop.permute.xlu0 %216
    %v220 = vsub.f32 %v202, %v215
    %v221 = vsub.f32 %v203, %v217
    %222 = vrot.lane.b32.xlu0 %v154, 124
    %v223 = vpop.permute.xlu0 %222
    %224 = vrot.lane.b32.xlu0 %v155, 124
    %v225 = vpop.permute.xlu0 %224
    %v228 = vmul.f32 %v97, %v223
    %v229 = vmul.f32 %v100, %v225
    %230 = vrot.lane.b32.xlu0 %v144, 126
    %v231 = vpop.permute.xlu0 %230
    %232 = vrot.lane.b32.xlu0 %v145, 126
    %v233 = vpop.permute.xlu0 %232
    %v236 = vmul.f32 %v97, %v231
    %v237 = vmul.f32 %v100, %v233
    %240 = vrot.lane.b32.xlu0 %v236, 127
    %v241 = vpop.permute.xlu0 %240
    %242 = vrot.lane.b32.xlu0 %v237, 127
    %v243 = vpop.permute.xlu0 %242
    %v246 = vsub.f32 %v228, %v241
    %v247 = vsub.f32 %v229, %v243
    %v248 = vmul.f32 %v192, %v192
    %v249 = vmul.f32 %v193, %v193
    %v250 = vmul.f32 %v220, %v220
    %v251 = vmul.f32 %v221, %v221
    %254 = vrot.lane.b32.xlu0 %v250, 127
    %v255 = vpop.permute.xlu0 %254
    %256 = vrot.lane.b32.xlu0 %v251, 127
    %v257 = vpop.permute.xlu0 %256
    %v260 = vadd.f32 %v248, %v255
    %v261 = vadd.f32 %v249, %v257
    %v262 = vmul.f32 %v246, %v246
    %v263 = vmul.f32 %v247, %v247
    %266 = vrot.lane.b32.xlu0 %v262, 1
    %v267 = vpop.permute.xlu0 %266
    %268 = vrot.lane.b32.xlu0 %v263, 1
    %v269 = vpop.permute.xlu0 %268
    %v272 = vadd.f32 %v260, %v267
    %v273 = vadd.f32 %v261, %v269
    %v274 = vmax.f32 %v272, 1e-24
    %v275 = vmax.f32 %v273, 1e-24
    %v276 = vrsqrt.pop %v274
    %v277 = vmul.f32 %v276, %v274
    %v278 = vmul.f32 %v277, %v276
    %v279 = vmul.f32 0.5, %v278
    %v280 = vsub.f32 1.5, %v279
    %v281 = vmul.f32 %v276, %v280
    %vm282 = vweird.f32 %v274
    %vm283 = vweird.f32 %v276
    %vm284 = vmor %vm282, %vm283
    %v285 = vsel %vm284, %v276, %v281
    %v286 = vrsqrt.pop %v275
    %v287 = vmul.f32 %v286, %v275
    %v288 = vmul.f32 %v287, %v286
    %v289 = vmul.f32 0.5, %v288
    %v290 = vsub.f32 1.5, %v289
    %v291 = vmul.f32 %v286, %v290
    %vm292 = vweird.f32 %v275
    %vm293 = vweird.f32 %v286
    %vm294 = vmor %vm292, %vm293
    %v295 = vsel %vm294, %v286, %v291
    %v296 = vmul.f32 %v192, %v285
    %v297 = vmul.f32 %v193, %v295
    %300 = vrot.lane.b32.xlu0 %v285, 1
    %v301 = vpop.permute.xlu0 %300
    %302 = vrot.lane.b32.xlu0 %v295, 1
    %v303 = vpop.permute.xlu0 %302
    %v306 = vmul.f32 %v220, %v301
    %v307 = vmul.f32 %v221, %v303
    %308 = vrot.lane.b32.xlu0 %v285, 127
    %v309 = vpop.permute.xlu0 %308
    %310 = vrot.lane.b32.xlu0 %v295, 127
    %v311 = vpop.permute.xlu0 %310
    %v314 = vmul.f32 %v246, %v309
    %v315 = vmul.f32 %v247, %v311
    %318 = vrot.lane.b32.xlu0 %v314, 4
    %v319 = vpop.permute.xlu0 %318
    %320 = vrot.lane.b32.xlu0 %v315, 4
    %v321 = vpop.permute.xlu0 %320
    %v324 = vmul.f32 %v154, %v319
    %v325 = vmul.f32 %v155, %v321
    %328 = vrot.lane.b32.xlu0 %v306, 3
    %v329 = vpop.permute.xlu0 %328
    %330 = vrot.lane.b32.xlu0 %v307, 3
    %v331 = vpop.permute.xlu0 %330
    %v334 = vmul.f32 %v162, %v329
    %v335 = vmul.f32 %v163, %v331
    %338 = vrot.lane.b32.xlu0 %v334, 127
    %v339 = vpop.permute.xlu0 %338
    %340 = vrot.lane.b32.xlu0 %v335, 127
    %v341 = vpop.permute.xlu0 %340
    %v344 = vsub.f32 %v324, %v339
    %v345 = vsub.f32 %v325, %v341
    %348 = vrot.lane.b32.xlu0 %v296, 4
    %v349 = vpop.permute.xlu0 %348
    %350 = vrot.lane.b32.xlu0 %v297, 4
    %v351 = vpop.permute.xlu0 %350
    %v354 = vmul.f32 %v162, %v349
    %v355 = vmul.f32 %v163, %v351
    %356 = vrot.lane.b32.xlu0 %v314, 3
    %v357 = vpop.permute.xlu0 %356
    %358 = vrot.lane.b32.xlu0 %v315, 3
    %v359 = vpop.permute.xlu0 %358
    %v362 = vmul.f32 %v144, %v357
    %v363 = vmul.f32 %v145, %v359
    %366 = vrot.lane.b32.xlu0 %v362, 2
    %v367 = vpop.permute.xlu0 %366
    %368 = vrot.lane.b32.xlu0 %v363, 2
    %v369 = vpop.permute.xlu0 %368
    %v372 = vsub.f32 %v354, %v367
    %v373 = vsub.f32 %v355, %v369
    %374 = vrot.lane.b32.xlu0 %v306, 1
    %v375 = vpop.permute.xlu0 %374
    %376 = vrot.lane.b32.xlu0 %v307, 1
    %v377 = vpop.permute.xlu0 %376
    %v380 = vmul.f32 %v144, %v375
    %v381 = vmul.f32 %v145, %v377
    %382 = vrot.lane.b32.xlu0 %v296, 3
    %v383 = vpop.permute.xlu0 %382
    %384 = vrot.lane.b32.xlu0 %v297, 3
    %v385 = vpop.permute.xlu0 %384
    %v388 = vmul.f32 %v154, %v383
    %v389 = vmul.f32 %v155, %v385
    %392 = vrot.lane.b32.xlu0 %v388, 127
    %v393 = vpop.permute.xlu0 %392
    %394 = vrot.lane.b32.xlu0 %v389, 127
    %v395 = vpop.permute.xlu0 %394
    %v398 = vsub.f32 %v380, %v393
    %v399 = vsub.f32 %v381, %v395
    %v400 = vlaneseq
    %v401 = vand.u32 %v400, 127
    %vm402 = vcmp.eq.s32.totalorder %v401, 0
    %404 = vset.pattern.permute.xlu0 4
    %405 = vperm.xlu0 %404, %v344
    %v406 = vpop.permute.xlu0 %405
    %409 = vset.pattern.permute.xlu0 4
    %410 = vperm.xlu0 %409, %v345
    %v411 = vpop.permute.xlu0 %410
    %v413 = vsel %vm402, %v406, %v97
    %v414 = vsel %vm402, %v411, %v100
    %vm415 = vcmp.eq.s32.totalorder %v401, 1
    %417 = vset.pattern.permute.xlu0 5
    %418 = vperm.xlu0 %417, %v372
    %v419 = vpop.permute.xlu0 %418
    %422 = vset.pattern.permute.xlu0 5
    %423 = vperm.xlu0 %422, %v373
    %v424 = vpop.permute.xlu0 %423
    %v426 = vsel %vm415, %v419, %v413
    %v427 = vsel %vm415, %v424, %v414
    %vm428 = vcmp.eq.s32.totalorder %v401, 2
    %430 = vset.pattern.permute.xlu0 3
    %431 = vperm.xlu0 %430, %v398
    %v432 = vpop.permute.xlu0 %431
    %435 = vset.pattern.permute.xlu0 3
    %436 = vperm.xlu0 %435, %v399
    %v437 = vpop.permute.xlu0 %436
    %v439 = vsel %vm428, %v432, %v426
    %v440 = vsel %vm428, %v437, %v427
    %vm441 = vcmp.eq.s32.totalorder %v401, 3
    %442 = vset.pattern.permute.xlu0 3
    %443 = vperm.xlu0 %442, %v144
    %v444 = vpop.permute.xlu0 %443
    %446 = vset.pattern.permute.xlu0 3
    %447 = vperm.xlu0 %446, %v145
    %v448 = vpop.permute.xlu0 %447
    %v450 = vsel %vm441, %v444, %v439
    %v451 = vsel %vm441, %v448, %v440
    %vm452 = vcmp.eq.s32.totalorder %v401, 4
    %453 = vset.pattern.permute.xlu0 4
    %454 = vperm.xlu0 %453, %v154
    %v455 = vpop.permute.xlu0 %454
    %457 = vset.pattern.permute.xlu0 4
    %458 = vperm.xlu0 %457, %v155
    %v459 = vpop.permute.xlu0 %458
    %v461 = vsel %vm452, %v455, %v450
    %v462 = vsel %vm452, %v459, %v451
    %vm463 = vcmp.eq.s32.totalorder %v401, 5
    %464 = vset.pattern.permute.xlu0 5
    %465 = vperm.xlu0 %464, %v162
    %v466 = vpop.permute.xlu0 %465
    %468 = vset.pattern.permute.xlu0 5
    %469 = vperm.xlu0 %468, %v163
    %v470 = vpop.permute.xlu0 %469
    %v472 = vsel %vm463, %v466, %v461
    %v473 = vsel %vm463, %v470, %v462
    %vm474 = vcmp.eq.s32.totalorder %v401, 12
    %475 = vset.pattern.permute.xlu0 1
    %476 = vperm.xlu0 %475, %v296
    %v477 = vpop.permute.xlu0 %476
    %479 = vset.pattern.permute.xlu0 1
    %480 = vperm.xlu0 %479, %v297
    %v481 = vpop.permute.xlu0 %480
    %v483 = vsel %vm474, %v477, %v472
    %v484 = vsel %vm474, %v481, %v473
    %vm485 = vcmp.eq.s32.totalorder %v401, 13
    %486 = vset.pattern.permute.xlu0 2
    %487 = vperm.xlu0 %486, %v306
    %v488 = vpop.permute.xlu0 %487
    %490 = vset.pattern.permute.xlu0 2
    %491 = vperm.xlu0 %490, %v307
    %v492 = vpop.permute.xlu0 %491
    %v494 = vsel %vm485, %v488, %v483
    %v495 = vsel %vm485, %v492, %v484
    %vm496 = vcmp.eq.s32.totalorder %v401, 14
    %497 = vset.pattern.permute.xlu0 0
    %498 = vperm.xlu0 %497, %v314
    %v499 = vpop.permute.xlu0 %498
    %501 = vset.pattern.permute.xlu0 0
    %502 = vperm.xlu0 %501, %v315
    %v503 = vpop.permute.xlu0 %502
    %v505 = vsel %vm496, %v499, %v494
    %v506 = vsel %vm496, %v503, %v495
    %vm507 = vcmask 130048
    %508 = vst.msk [vmem:[#allocation2] sm:$0xff] %vm507, %v505
    %509 = vst.msk [vmem:[#allocation2 + $0x8] sm:$0xff] %vm507, %v506
    // Predicated region
    $region22: #{pose_estimater_forward.1} parent=1 // pred_check
      _
    $region23: #{pose_estimater_forward.1} parent=1 // pred_check_branch
      %511 = sbr.rel (0) target = $region25
    $region24: #{pose_estimater_forward.1} parent=1 // pred_region
      // Predicated region
      $region26: #{pose_estimater_forward.1} parent=24 // pred_check
        _
      $region27: #{pose_estimater_forward.1} parent=24 // pred_check_branch
        %513 = sbr.rel (0) target = $region29
      $region28: #{pose_estimater_forward.1} parent=24 // pred_region
        // Predicated region
        $region30: #{pose_estimater_forward.1} parent=28 // pred_check
          _
        $region31: #{pose_estimater_forward.1} parent=28 // pred_check_branch
          %515 = sbr.rel target = $region33
        $region32: #{pose_estimater_forward.1} parent=28 // pred_region
          // Predicated region
          $region45: #{pose_estimater_forward.1} parent=32 // pred_check
            _
          $region46: #{pose_estimater_forward.1} parent=32 // pred_check_branch
            %531 = sbr.rel (0) target = $region48
          $region47: #{pose_estimater_forward.1} parent=32 // pred_region
            %s533 = ssub.s32 4, 1
            loop: start=0, step=1, limit=1
            $region49: #{pose_estimater_forward.1} parent=47 // loop_pre_header
              _
            $region50: #{pose_estimater_forward.1} parent=47 // loop_header
              %s535 = sphi 0, %s539
              %p536 = scmp.ge.s32.totalorder %s535, 1
              %s540 = sphi [#allocation2], [#allocation2]
              %s541 = sphi %s5, %s5
            $region51: #{pose_estimater_forward.1} parent=47 // loop_header_branch
              %538 = sbr.rel (%p536) target = $region55
            $region52: #{pose_estimater_forward.1} parent=47 // loop_body
              %v542 = vld [vmem:[%s540] sm:%s533]
              %543 = vst [vmem:[%s541] sm:%s533] %v542
            $region53: #{pose_estimater_forward.1} parent=47 // loop_footer
              %s539 = sadd.s32 1, %s535
            $region54: #{pose_estimater_forward.1} parent=47 // loop_footer_branch
              %534 = sbr.rel target = $region50
            $region55: #{pose_estimater_forward.1} parent=47 // loop_exit
              _
          $region48: #{pose_estimater_forward.1} parent=32 // pred_fallthru
            _
        $region33: #{pose_estimater_forward.1} parent=28 // pred_fallthru
          _
        // Predicated region
        $region34: #{pose_estimater_forward.1} parent=28 // pred_check
          _
        $region35: #{pose_estimater_forward.1} parent=28 // pred_check_branch
          %517 = sbr.rel (0) target = $region37
        $region36: #{pose_estimater_forward.1} parent=28 // pred_region
          %s519 = ssub.s32 4, 1
          loop: start=0, step=1, limit=1
          $region38: #{pose_estimater_forward.1} parent=36 // loop_pre_header
            _
          $region39: #{pose_estimater_forward.1} parent=36 // loop_header
            %s521 = sphi 0, %s525
            %p522 = scmp.ge.s32.totalorder %s521, 1
            %s526 = sphi [#allocation2], [#allocation2]
            %s527 = sphi %s5, %s5
          $region40: #{pose_estimater_forward.1} parent=36 // loop_header_branch
            %524 = sbr.rel (%p522) target = $region44
          $region41: #{pose_estimater_forward.1} parent=36 // loop_body
            %v528 = vld [vmem:[%s526] sm:%s519]
            %529 = vst [vmem:[%s527] sm:%s519] %v528
          $region42: #{pose_estimater_forward.1} parent=36 // loop_footer
            %s525 = sadd.s32 1, %s521
          $region43: #{pose_estimater_forward.1} parent=36 // loop_footer_branch
            %520 = sbr.rel target = $region39
          $region44: #{pose_estimater_forward.1} parent=36 // loop_exit
            _
        $region37: #{pose_estimater_forward.1} parent=28 // pred_fallthru
          _
      $region29: #{pose_estimater_forward.1} parent=24 // pred_fallthru
        _
      %544 = vnop
    $region25: #{pose_estimater_forward.1} parent=1 // pred_fallthru
      _
    // Predicated region
    $region56: #{pose_estimater_forward.1} parent=1 // pred_check
      _
    $region57: #{pose_estimater_forward.1} parent=1 // pred_check_branch
      %546 = sbr.rel (0) target = $region59
    $region58: #{pose_estimater_forward.1} parent=1 // pred_region
      _
    $region59: #{pose_estimater_forward.1} parent=1 // pred_fallthru
      _

</llo_original>
